<compile_context>
chip_gen: v6e
topology: v6e:2x2x1
jax: 0.10.0
libtpu: 0.0.40
codegen_flags: <defaults>
</compile_context>

<pallas_src>
import jax
import jax.numpy as jnp
from jax.experimental import pallas as pl
from jax.experimental.pallas import tpu as pltpu


# ----------------------------------------------------------------------------
# Interpolation weights (PyTorch bilinear, align_corners=False)
# ----------------------------------------------------------------------------
def _bilinear_matrix(in_size: int, scale: int) -> jnp.ndarray:
    """Dense (out, in) interpolation matrix, PyTorch bilinear align_corners=False."""
    out_size = in_size * scale
    o = jnp.arange(out_size, dtype=jnp.float32)
    src = (o + 0.5) / scale - 0.5
    src = jnp.maximum(src, 0.0)                      # PyTorch clamps negative coords
    i0 = jnp.floor(src).astype(jnp.int32)
    i0 = jnp.minimum(i0, in_size - 1)
    i1 = jnp.minimum(i0 + 1, in_size - 1)
    frac = src - i0.astype(jnp.float32)
    oh0 = jax.nn.one_hot(i0, in_size, dtype=jnp.float32)
    oh1 = jax.nn.one_hot(i1, in_size, dtype=jnp.float32)
    return (1.0 - frac)[:, None] * oh0 + frac[:, None] * oh1       # (out, in)


# ----------------------------------------------------------------------------
# Per-generation VMEM budgeting and block selection
# ----------------------------------------------------------------------------
def _vmem_capacity_bytes() -> int:
    try:
        return int(pltpu.get_tpu_info().vmem_capacity_bytes)
    except Exception:
        return 64 << 20          # conservative fallback (v7x per-core VMEM)


def _rup(n: int, m: int) -> int:
    return -(-n // m) * m


def _block_bytes(B, C, H, W, tHo, Wo, x_itemsize, out_itemsize) -> int:
    """Approximate per-step VMEM footprint (double-buffered blocks + scratch +
    live f32 intermediates), with lane/sublane padding."""
    Wl, Wol, Hl = _rup(W, 128), _rup(Wo, 128), _rup(H, 128)
    x_blk = 2 * B * C * _rup(H, 8) * Wl * x_itemsize           # input block (2-buf)
    wh_blk = 2 * _rup(tHo, 8) * Hl * 2                         # Wh row tile (bf16)
    wwt_blk = 2 * _rup(W, 8) * Wol * 2                         # Ww^T (bf16)
    out_blk = 2 * B * _rup(tHo, 8) * Wol * out_itemsize        # output block (2-buf)
    slab = _rup(B * tHo, 8) * Wl * 2                           # bf16 scratch slab
    interm = (B * _rup(tHo, 8) * Wol * 4                       # W-side f32 result
              + _rup(tHo, 8) * Wl * 4                          # one H-side f32 result
              + _rup(H, 8) * Wl * 4)                           # one averaged f32 image
    return x_blk + wh_blk + wwt_blk + out_blk + slab + interm


def _row_tile_candidates(ho: int):
    """Multiple-of-8 divisors of ho, largest first (ho itself if not divisible)."""
    if ho % 8 != 0:
        return [ho]
    return sorted((d for d in range(8, ho + 1, 8) if ho % d == 0), reverse=True)


def _select_blocks(N, C, H, W, Ho, Wo, x_itemsize, out_itemsize, budget):
    """Pick (B, tHo) maximizing the output block size under the VMEM budget."""
    tho_cands = _row_tile_candidates(Ho)
    b_max = min(8, N)
    if Ho % 8 != 0:
        b_max = 1                 # keep the in-kernel view-reshape sublane-aligned
    best = None
    for B in range(b_max, 0, -1):
        for tHo in tho_cands:
            if _block_bytes(B, C, H, W, tHo, Wo, x_itemsize, out_itemsize) <= budget:
                score = B * tHo
                if best is None or score > best[0] or (score == best[0] and B > best[1]):
                    best = (score, B, tHo)
                break             # candidates descend: first fit is largest tHo for B
    if best is None:
        return 1, tho_cands[-1]
    return best[1], best[2]


# ----------------------------------------------------------------------------
# Kernel
# ----------------------------------------------------------------------------
def _make_kernel(B: int, C: int, H: int, W: int, tHo: int, Wo: int, fold: bool):
    inv_c = 1.0 / C

    def kernel(mean_ref, std_ref, istd_ref, x_ref, wh_ref, wwt_ref, o_ref, slab_ref):
        # mean/std/istd: SMEM (C,)
        # x_ref:   VMEM (B, C, H, W)       NCHW block (no wrapper transpose)
        # wh_ref:  VMEM (tHo, H)  bf16     output-row tile of Wh
        # wwt_ref: VMEM (W, Wo)   bf16     Ww^T, resident across the grid
        # o_ref:   VMEM (B, 1, tHo, Wo)
        # slab_ref:VMEM (B*tHo, W) bf16    stacked H-side results (scratch)
        wh = wh_ref[...]

        if fold:
            # Identity wrapped model: normalize/denormalize cancel exactly and the
            # channel-mean commutes with the (linear) bilinear interpolation, so
            # average the channels on the VPU first, then one separable upsample.
            for b in range(B):                       # one (tHo, W) live value at a time
                xb = x_ref[b, 0].astype(jnp.float32)
                for c in range(1, C):
                    xb = xb + x_ref[b, c].astype(jnp.float32)
                xb = (xb * inv_c).astype(jnp.bfloat16)                        # (H, W)
                th = jnp.dot(wh, xb, preferred_element_type=jnp.float32)      # (tHo, W)
                slab_ref[pl.ds(b * tHo, tHo), :] = th.astype(jnp.bfloat16)
            # Single W-side matmul on the stacked slab, single contiguous store.
            y = jnp.dot(slab_ref[...], wwt_ref[...],
                        preferred_element_type=jnp.float32)                   # (B*tHo, Wo)
            o_ref[...] = y.reshape(B, 1, tHo, Wo).astype(o_ref.dtype)
        else:
            # Faithful per-channel path (template for a real, non-identity model).
            # b-outer / c-inner: one f32 accumulator live at a time; the denorm
            # std-scale and channel-sum commute with the (linear) W-side matmul.
            msum = mean_ref[0]
            for c in range(1, C):
                msum = msum + mean_ref[c]
            for b in range(B):
                acc = jnp.zeros((tHo, W), jnp.float32)
                for c in range(C):
                    xn = ((x_ref[b, c].astype(jnp.float32) - mean_ref[c])
                          * istd_ref[c]).astype(jnp.bfloat16)                 # (H, W)
                    th = jnp.dot(wh, xn, preferred_element_type=jnp.float32)  # (tHo, W)
                    acc = acc + std_ref[c] * th                               # denorm scale
                slab_ref[pl.ds(b * tHo, tHo), :] = acc.astype(jnp.bfloat16)
            y = jnp.dot(slab_ref[...], wwt_ref[...],
                        preferred_element_type=jnp.float32)                   # (B*tHo, Wo)
            o_ref[...] = (((y + msum) * inv_c)
                          .reshape(B, 1, tHo, Wo).astype(o_ref.dtype))

    return kernel


# ----------------------------------------------------------------------------
# Wrapper
# ----------------------------------------------------------------------------
def bilinear_wrapper_forward(x, mean, std, scale=4, *, batch_block=None,
                             row_tile=None, fold_normalization=True):
    """BilinearWrapper forward (wrapped model = identity).

    x: (N, C, H, W).  Returns (N, 1, scale*H, scale*W) with x's dtype.
    Pass bf16 activations to halve the input DMA bytes (no wrapper-side cast).
    """
    N, C, H, W = x.shape
    assert mean.shape == (C,) and std.shape == (C,)
    Ho, Wo = H * scale, W * scale

    out_dtype = x.dtype
    x_isz = jnp.dtype(x.dtype).itemsize
    o_isz = jnp.dtype(out_dtype).itemsize

    # ---- per-generation VMEM budget -> block selection ----
    vmem_cap = _vmem_capacity_bytes()
    budget = min(int(0.70 * vmem_cap), 100 << 20)   # ~44 MiB on v7x, ~90 MiB on v5e/v6e
    B_sel, tHo_sel = _select_blocks(N, C, H, W, Ho, Wo, x_isz, o_isz, budget)
    B = B_sel if batch_block is None else max(1, min(batch_block, N))
    tHo = tHo_sel if row_tile is None else row_tile
    assert Ho % tHo == 0 and (tHo % 8 == 0 or tHo == Ho)

    # ---- batch blocking (pad N up to a multiple of the block) ----
    n_blocks = pl.cdiv(N, B)
    n_pad = n_blocks * B
    if n_pad != N:
        x = jnp.concatenate([x, jnp.zeros((n_pad - N, C, H, W), x.dtype)], axis=0)

    # Separable interpolation matrices (align_corners=False); exact in bf16 for scale=4.
    wh = _bilinear_matrix(H, scale).astype(jnp.bfloat16)            # (Ho, H)
    wwt = _bilinear_matrix(W, scale).T.astype(jnp.bfloat16)         # (W, Wo)

    mean_f = mean.astype(jnp.float32)
    std_f = std.astype(jnp.float32)
    istd_f = (1.0 / std_f).astype(jnp.float32)

    kernel = _make_kernel(B, C, H, W, tHo, Wo, fold_normalization)

    used = _block_bytes(B, C, H, W, tHo, Wo, x_isz, o_isz)
    vmem_limit = int(min(0.85 * vmem_cap, max(32 << 20, int(1.5 * used))))

    out = pl.pallas_call(
        kernel,
        out_shape=jax.ShapeDtypeStruct((n_pad, 1, Ho, Wo), out_dtype),
        grid_spec=pltpu.PrefetchScalarGridSpec(
            num_scalar_prefetch=0,
            grid=(n_blocks, Ho // tHo),
            in_specs=[
                pl.BlockSpec(memory_space=pltpu.MemorySpace.SMEM),        # mean  (C,)
                pl.BlockSpec(memory_space=pltpu.MemorySpace.SMEM),        # std   (C,)
                pl.BlockSpec(memory_space=pltpu.MemorySpace.SMEM),        # 1/std (C,)
                pl.BlockSpec((B, C, H, W), lambda b, j: (b, 0, 0, 0)),    # x (NCHW, reused over j)
                pl.BlockSpec((tHo, H), lambda b, j: (j, 0)),              # Wh row tile
                pl.BlockSpec((W, Wo), lambda b, j: (0, 0)),               # Ww^T (resident)
            ],
            out_specs=pl.BlockSpec((B, 1, tHo, Wo), lambda b, j: (b, 0, j, 0)),
            scratch_shapes=[pltpu.VMEM((B * tHo, W), jnp.bfloat16)],      # stacked slab
        ),
        compiler_params=pltpu.CompilerParams(
            dimension_semantics=("parallel", "parallel"),   # disjoint output blocks
            vmem_limit_bytes=vmem_limit),
    )(mean_f, std_f, istd_f, x, wh, wwt)
    return out[:N]


# ----------------------------------------------------------------------------
# Pure-JAX reference and self-test
# ----------------------------------------------------------------------------
def _reference(x, mean, std, scale):
    """Pure-JAX f32 reference of the module forward (identity model)."""
    _, _, H, W = x.shape
    wh = _bilinear_matrix(H, scale)
    ww = _bilinear_matrix(W, scale)
    xn = (x - mean[None, :, None, None]) / std[None, :, None, None]
    up = jnp.einsum("oh,nchw,pw->ncop", wh, xn, ww)
    pred = up * std[None, :, None, None] + mean[None, :, None, None]
    return jnp.mean(pred, axis=1, keepdims=True)


if __name__ == "__main__":
    key = jax.random.PRNGKey(0)
    N, C, H, W, scale = 2, 3, 16, 16, 4
    x = jax.random.normal(key, (N, C, H, W), dtype=jnp.float32)

    # Parameters as initialized in BilinearWrapper.__init__
    mean = jnp.array([0.0, 0.0, 0.0], dtype=jnp.float32)
    std = jnp.array([1.0, 1.0, 1.0], dtype=jnp.float32)

    out = bilinear_wrapper_forward(x, mean, std, scale=scale)
    jax.block_until_ready(out)
    assert out.shape == (N, 1, scale * H, scale * W), out.shape
    ref = _reference(x, mean, std, scale)
    assert float(jnp.max(jnp.abs(out - ref))) < 5e-2

    # Non-trivial mean/std: fused path (identity model => exact algebra) and the
    # faithful per-channel path must both match the reference.
    mean2 = jnp.array([0.1, -0.2, 0.3], dtype=jnp.float32)
    std2 = jnp.array([0.5, 1.0, 2.0], dtype=jnp.float32)
    ref2 = _reference(x, mean2, std2, scale)
    out_fold = bilinear_wrapper_forward(x, mean2, std2, scale=scale)
    out_full = bilinear_wrapper_forward(x, mean2, std2, scale=scale,
                                        fold_normalization=False)
    jax.block_until_ready((out_fold, out_full))
    assert float(jnp.max(jnp.abs(out_fold - ref2))) < 5e-2
    assert float(jnp.max(jnp.abs(out_full - ref2))) < 5e-2

    # Odd batch (exercises batch padding) and explicit small blocks (exercises
    # the j row-tile axis with the new slab/order-swapped path).
    x3 = jax.random.normal(jax.random.PRNGKey(1), (3, C, H, W), dtype=jnp.float32)
    ref3 = _reference(x3, mean2, std2, scale)
    out3 = bilinear_wrapper_forward(x3, mean2, std2, scale=scale,
                                    batch_block=2, row_tile=16)
    jax.block_until_ready(out3)
    assert float(jnp.max(jnp.abs(out3 - ref3))) < 5e-2

    print("KERNEL_OK")
</pallas_src>

<mosaic_0001>
module attributes {stable_mosaic.version = 11 : i64} {
  func.func @kernel(%arg0: i32, %arg1: i32, %arg2: memref<3xf32, #tpu.memory_space<smem>>, %arg3: memref<3xf32, #tpu.memory_space<smem>>, %arg4: memref<3xf32, #tpu.memory_space<smem>>, %arg5: memref<2x3x16x16xf32, #tpu.memory_space<vmem>>, %arg6: memref<64x16xbf16, #tpu.memory_space<vmem>>, %arg7: memref<16x64xbf16, #tpu.memory_space<vmem>>, %arg8: memref<2x1x64x64xf32, #tpu.memory_space<vmem>>, %arg9: memref<128x16xbf16, #tpu.memory_space<vmem>>) attributes {dimension_semantics = [#tpu.dimension_semantics<parallel>, #tpu.dimension_semantics<parallel>], iteration_bounds = array<i64: 1, 1>, scalar_prefetch = 0 : i64, scratch_operands = 1 : i64, tpu.core_type = #tpu.core_type<tc>, window_params = [{transform_indices = @transform_0, window_bounds = array<i64: 3>}, {transform_indices = @transform_1, window_bounds = array<i64: 3>}, {transform_indices = @transform_2, window_bounds = array<i64: 3>}, {transform_indices = @transform_3, window_bounds = array<i64: 2, 3, 16, 16>}, {transform_indices = @transform_4, window_bounds = array<i64: 64, 16>}, {pipeline_mode = #tpu.pipeline_mode<synchronous>, transform_indices = @transform_5, window_bounds = array<i64: 16, 64>}, {transform_indices = @transform_6, window_bounds = array<i64: 2, 1, 64, 64>}]} {
    %c0 = arith.constant 0 : index
    %c0_0 = arith.constant 0 : index
    %0 = vector.load %arg6[%c0, %c0_0] : memref<64x16xbf16, #tpu.memory_space<vmem>>, vector<64x16xbf16>
    %c0_1 = arith.constant 0 : index
    %c0_2 = arith.constant 0 : index
    %c0_3 = arith.constant 0 : index
    %c0_4 = arith.constant 0 : index
    %1 = vector.load %arg5[%c0_1, %c0_2, %c0_3, %c0_4] : memref<2x3x16x16xf32, #tpu.memory_space<vmem>>, vector<1x1x16x16xf32>
    %2 = vector.shape_cast %1 : vector<1x1x16x16xf32> to vector<16x16xf32>
    %c0_5 = arith.constant 0 : index
    %c1 = arith.constant 1 : index
    %c0_6 = arith.constant 0 : index
    %c0_7 = arith.constant 0 : index
    %3 = vector.load %arg5[%c0_5, %c1, %c0_6, %c0_7] : memref<2x3x16x16xf32, #tpu.memory_space<vmem>>, vector<1x1x16x16xf32>
    %4 = vector.shape_cast %3 : vector<1x1x16x16xf32> to vector<16x16xf32>
    %5 = arith.addf %2, %4 : vector<16x16xf32>
    %c0_8 = arith.constant 0 : index
    %c2 = arith.constant 2 : index
    %c0_9 = arith.constant 0 : index
    %c0_10 = arith.constant 0 : index
    %6 = vector.load %arg5[%c0_8, %c2, %c0_9, %c0_10] : memref<2x3x16x16xf32, #tpu.memory_space<vmem>>, vector<1x1x16x16xf32>
    %7 = vector.shape_cast %6 : vector<1x1x16x16xf32> to vector<16x16xf32>
    %8 = arith.addf %5, %7 : vector<16x16xf32>
    %cst = arith.constant 0.333333343 : f32
    %9 = vector.broadcast %cst : f32 to vector<16x16xf32>
    %10 = arith.mulf %8, %9 : vector<16x16xf32>
    %11 = arith.truncf %10 : vector<16x16xf32> to vector<16x16xbf16>
    %cst_11 = arith.constant dense<0.000000e+00> : vector<64x16xf32>
    %12 = tpu.matmul %0, %11, %cst_11 {dimension_numbers = #tpu.dot_dimension_numbers<[1], [0], [0], [1], [0, 0, 1, 1], [], []>} : vector<64x16xbf16>, vector<16x16xbf16>, vector<64x16xf32> -> vector<64x16xf32>
    %13 = arith.truncf %12 : vector<64x16xf32> to vector<64x16xbf16>
    %c0_12 = arith.constant 0 : index
    %c0_13 = arith.constant 0 : index
    %14 = vector.load %arg9[%c0_12, %c0_13] : memref<128x16xbf16, #tpu.memory_space<vmem>>, vector<64x16xbf16>
    tpu.vector_store %arg9[%c0_12, %c0_13], %13 {strides = array<i32>} : memref<128x16xbf16, #tpu.memory_space<vmem>>, vector<64x16xbf16>,
    %c1_14 = arith.constant 1 : index
    %c0_15 = arith.constant 0 : index
    %c0_16 = arith.constant 0 : index
    %c0_17 = arith.constant 0 : index
    %15 = vector.load %arg5[%c1_14, %c0_15, %c0_16, %c0_17] : memref<2x3x16x16xf32, #tpu.memory_space<vmem>>, vector<1x1x16x16xf32>
    %16 = vector.shape_cast %15 : vector<1x1x16x16xf32> to vector<16x16xf32>
    %c1_18 = arith.constant 1 : index
    %c1_19 = arith.constant 1 : index
    %c0_20 = arith.constant 0 : index
    %c0_21 = arith.constant 0 : index
    %17 = vector.load %arg5[%c1_18, %c1_19, %c0_20, %c0_21] : memref<2x3x16x16xf32, #tpu.memory_space<vmem>>, vector<1x1x16x16xf32>
    %18 = vector.shape_cast %17 : vector<1x1x16x16xf32> to vector<16x16xf32>
    %19 = arith.addf %16, %18 : vector<16x16xf32>
    %c1_22 = arith.constant 1 : index
    %c2_23 = arith.constant 2 : index
    %c0_24 = arith.constant 0 : index
    %c0_25 = arith.constant 0 : index
    %20 = vector.load %arg5[%c1_22, %c2_23, %c0_24, %c0_25] : memref<2x3x16x16xf32, #tpu.memory_space<vmem>>, vector<1x1x16x16xf32>
    %21 = vector.shape_cast %20 : vector<1x1x16x16xf32> to vector<16x16xf32>
    %22 = arith.addf %19, %21 : vector<16x16xf32>
    %cst_26 = arith.constant 0.333333343 : f32
    %23 = vector.broadcast %cst_26 : f32 to vector<16x16xf32>
    %24 = arith.mulf %22, %23 : vector<16x16xf32>
    %25 = arith.truncf %24 : vector<16x16xf32> to vector<16x16xbf16>
    %cst_27 = arith.constant dense<0.000000e+00> : vector<64x16xf32>
    %26 = tpu.matmul %0, %25, %cst_27 {dimension_numbers = #tpu.dot_dimension_numbers<[1], [0], [0], [1], [0, 0, 1, 1], [], []>} : vector<64x16xbf16>, vector<16x16xbf16>, vector<64x16xf32> -> vector<64x16xf32>
    %27 = arith.truncf %26 : vector<64x16xf32> to vector<64x16xbf16>
    %c64 = arith.constant 64 : index
    %c0_28 = arith.constant 0 : index
    %28 = vector.load %arg9[%c64, %c0_28] : memref<128x16xbf16, #tpu.memory_space<vmem>>, vector<64x16xbf16>
    tpu.vector_store %arg9[%c64, %c0_28], %27 {strides = array<i32>} : memref<128x16xbf16, #tpu.memory_space<vmem>>, vector<64x16xbf16>,
    %c0_29 = arith.constant 0 : index
    %c0_30 = arith.constant 0 : index
    %29 = vector.load %arg9[%c0_29, %c0_30] : memref<128x16xbf16, #tpu.memory_space<vmem>>, vector<128x16xbf16>
    %c0_31 = arith.constant 0 : index
    %c0_32 = arith.constant 0 : index
    %30 = vector.load %arg7[%c0_31, %c0_32] : memref<16x64xbf16, #tpu.memory_space<vmem>>, vector<16x64xbf16>
    %cst_33 = arith.constant dense<0.000000e+00> : vector<128x64xf32>
    %31 = tpu.matmul %29, %30, %cst_33 {dimension_numbers = #tpu.dot_dimension_numbers<[1], [0], [0], [1], [0, 0, 1, 1], [], []>} : vector<128x16xbf16>, vector<16x64xbf16>, vector<128x64xf32> -> vector<128x64xf32>
    %32 = vector.shape_cast %31 : vector<128x64xf32> to vector<2x1x64x64xf32>
    %c0_34 = arith.constant 0 : index
    %c0_35 = arith.constant 0 : index
    %c0_36 = arith.constant 0 : index
    %c0_37 = arith.constant 0 : index
    %33 = vector.load %arg8[%c0_34, %c0_35, %c0_36, %c0_37] : memref<2x1x64x64xf32, #tpu.memory_space<vmem>>, vector<2x1x64x64xf32>
    tpu.vector_store %arg8[%c0_34, %c0_35, %c0_36, %c0_37], %32 {strides = array<i32>} : memref<2x1x64x64xf32, #tpu.memory_space<vmem>>, vector<2x1x64x64xf32>,
    return
  }
  func.func @transform_0(%arg0: i32, %arg1: i32) -> i32 {
    %c0_i32 = arith.constant 0 : i32
    %c0_i32_0 = arith.constant 0 : i32
    return %c0_i32 : i32
  }
  func.func @transform_1(%arg0: i32, %arg1: i32) -> i32 {
    %c0_i32 = arith.constant 0 : i32
    %c0_i32_0 = arith.constant 0 : i32
    return %c0_i32 : i32
  }
  func.func @transform_2(%arg0: i32, %arg1: i32) -> i32 {
    %c0_i32 = arith.constant 0 : i32
    %c0_i32_0 = arith.constant 0 : i32
    return %c0_i32 : i32
  }
  func.func @transform_3(%arg0: i32, %arg1: i32) -> (i32, i32, i32, i32) {
    %c0_i32 = arith.constant 0 : i32
    %c0_i32_0 = arith.constant 0 : i32
    %c0_i32_1 = arith.constant 0 : i32
    %c0_i32_2 = arith.constant 0 : i32
    return %arg0, %c0_i32, %c0_i32_0, %c0_i32_1 : i32, i32, i32, i32
  }
  func.func @transform_4(%arg0: i32, %arg1: i32) -> (i32, i32) {
    %c0_i32 = arith.constant 0 : i32
    %c0_i32_0 = arith.constant 0 : i32
    return %arg1, %c0_i32 : i32, i32
  }
  func.func @transform_5(%arg0: i32, %arg1: i32) -> (i32, i32) {
    %c0_i32 = arith.constant 0 : i32
    %c0_i32_0 = arith.constant 0 : i32
    %c0_i32_1 = arith.constant 0 : i32
    return %c0_i32, %c0_i32_0 : i32, i32
  }
  func.func @transform_6(%arg0: i32, %arg1: i32) -> (i32, i32, i32, i32) {
    %c0_i32 = arith.constant 0 : i32
    %c0_i32_0 = arith.constant 0 : i32
    %c0_i32_1 = arith.constant 0 : i32
    return %arg0, %c0_i32, %arg1, %c0_i32_0 : i32, i32, i32, i32
  }
}

</mosaic_0001>

<llo_original>
// kernel: tpu_custom_call.1
$region0: #{tpu_custom_call.1}
  #allocation0 [shape = 'u32[]', space=smem, size = 0x4, offset = 0x4, fixed_abs, tag = 'smem constant byte address 0x4 - core index']
  #allocation1 [shape = 'u32[144,128]{1,0:T(1,128)}', space=vmem, size = 0x12000, scoped, tag = 'internal scratch']
  #allocation2 [shape = 'bf16[128,16]{1,0:T(8,128)(2,1)}', space=vmem, size = 0x8000, scoped, tag = 'scratch operand']
  %s0 = inlined_call_operand.vmem [shape: f32[3], index: 0, kind: input, shape index: {}]
  %s1 = inlined_call_operand.vmem [shape: f32[3], index: 1, kind: input, shape index: {}]
  %s2 = inlined_call_operand.vmem [shape: f32[3], index: 2, kind: input, shape index: {}]
  %s3 = inlined_call_operand.hbm [shape: f32[2,3,16,16], index: 3, kind: input, shape index: {}]
  %s4 = inlined_call_operand.vmem [shape: bf16[64,16], index: 4, kind: input, shape index: {}]
  %s5 = inlined_call_operand.vmem [shape: bf16[16,64], index: 5, kind: input, shape index: {}]
  %s6 = inlined_call_operand.hbm [shape: f32[2,1,64,64], index: 6, kind: output, shape index: {}]
  %s7 = sld [smem:[#allocation0]]
  $region50: #{tpu_custom_call.1} parent=0
    _
  %s9 = ssub.s32 1, %s7
  %s10 = scalar_select 0, %s9, %s7
  $region1: #{tpu_custom_call.1} parent=0
    #allocation3 [shape = 'u8[512]{0}', space=smem, size = 0x200, scoped, tag = 'input window, operand 0, single buffered']
    #allocation4 [shape = 's32[1]{0}', space=sflag, size = 0x4, scoped, tag = 'scoped memory for tpu_custom_call.1']
    #allocation5 [shape = 's32[1]{0}', space=sflag, size = 0x4, scoped, tag = 'scoped memory for tpu_custom_call.1']
    #allocation6 [shape = 's32[1]{0}', space=sflag, size = 0x4, scoped, tag = 'scoped memory for tpu_custom_call.1']
    #allocation7 [shape = 'u8[512]{0}', space=smem, size = 0x200, scoped, tag = 'input window, operand 1, single buffered']
    #allocation8 [shape = 's32[1]{0}', space=sflag, size = 0x4, scoped, tag = 'scoped memory for tpu_custom_call.1']
    #allocation9 [shape = 'u8[512]{0}', space=smem, size = 0x200, scoped, tag = 'input window, operand 2, single buffered']
    #allocation10 [shape = 'u8[49152]{0}', space=vmem, size = 0xc000, scoped, tag = 'input window, operand 3, single buffered']
    #allocation11 [shape = 'u8[65536]{0}', space=vmem, size = 0x10000, scoped, tag = 'output window, operand 0, single buffered']
    %11 = vsyncpa [#allocation6], 0
    %12 = vsyncpa [#allocation8], 0
    %13 = vsyncpa [#allocation4], 0
    %14 = vsyncpa [#allocation5], 0
    // Predicated region
    $region2: #{tpu_custom_call.1} parent=1 // pred_check
      _
    $region3: #{tpu_custom_call.1} parent=1 // pred_check_branch
      %16 = sbr.rel (0) target = $region5
    $region4: #{tpu_custom_call.1} parent=1 // pred_region
      %s18 = ssub.s32 16, 16
      %19 = vsyncadd [#allocation6], %s18
      %s21 = sshll.u32 %s0, 4
      %s22 = int_to_ptr.vmem [resolvable:$true] %s21
      %24 = dma.vmem_to_smem %s22, 16, [#allocation3], [#allocation6]
    $region5: #{tpu_custom_call.1} parent=1 // pred_fallthru
      _
    // Predicated region
    $region6: #{tpu_custom_call.1} parent=1 // pred_check
      _
    $region7: #{tpu_custom_call.1} parent=1 // pred_check_branch
      %26 = sbr.rel (0) target = $region9
    $region8: #{tpu_custom_call.1} parent=1 // pred_region
      %s28 = ssub.s32 16, 16
      %29 = vsyncadd [#allocation8], %s28
      %s31 = sshll.u32 %s1, 4
      %s32 = int_to_ptr.vmem [resolvable:$true] %s31
      %34 = dma.vmem_to_smem %s32, 16, [#allocation7], [#allocation8]
    $region9: #{tpu_custom_call.1} parent=1 // pred_fallthru
      _
    // Predicated region
    $region10: #{tpu_custom_call.1} parent=1 // pred_check
      _
    $region11: #{tpu_custom_call.1} parent=1 // pred_check_branch
      %36 = sbr.rel (0) target = $region13
    $region12: #{tpu_custom_call.1} parent=1 // pred_region
      %s38 = ssub.s32 16, 16
      %39 = vsyncadd [#allocation8], %s38
      %s41 = sshll.u32 %s2, 4
      %s42 = int_to_ptr.vmem [resolvable:$true] %s41
      %44 = dma.vmem_to_smem %s42, 16, [#allocation9], [#allocation8]
    $region13: #{tpu_custom_call.1} parent=1 // pred_fallthru
      _
    // Predicated region
    $region14: #{tpu_custom_call.1} parent=1 // pred_check
      _
    $region15: #{tpu_custom_call.1} parent=1 // pred_check_branch
      %46 = sbr.rel (0) target = $region17
    $region16: #{tpu_custom_call.1} parent=1 // pred_region
      %s48 = ssub.s32 1536, 1536
      %49 = vsyncadd [#allocation4], %s48
      %s50 = sshll.u32 [#allocation10], 4
      %s51 = int_to_ptr.vmem [resolvable:$true] %s50
      %56 = dma.hbm_to_vmem [thread:$0]  %s3, 1536, %s51, [#allocation4], 128, 128, 8
    $region17: #{tpu_custom_call.1} parent=1 // pred_fallthru
      _
    // Predicated region
    $region18: #{tpu_custom_call.1} parent=1 // pred_check
      _
    $region19: #{tpu_custom_call.1} parent=1 // pred_check_branch
      %58 = sbr.rel (0) target = $region21
    $region20: #{tpu_custom_call.1} parent=1 // pred_region
      _
    $region21: #{tpu_custom_call.1} parent=1 // pred_fallthru
      _
    // Predicated region
    $region22: #{tpu_custom_call.1} parent=1 // pred_check
      _
    $region23: #{tpu_custom_call.1} parent=1 // pred_check_branch
      %60 = sbr.rel (0) target = $region25
    $region24: #{tpu_custom_call.1} parent=1 // pred_region
      _
    $region25: #{tpu_custom_call.1} parent=1 // pred_fallthru
      _
    // Predicated region
    $region26: #{tpu_custom_call.1} parent=1 // pred_check
      _
    $region27: #{tpu_custom_call.1} parent=1 // pred_check_branch
      %62 = sbr.rel (0) target = $region29
    $region28: #{tpu_custom_call.1} parent=1 // pred_region
      %63 = dma.done [#allocation6], 16
    $region29: #{tpu_custom_call.1} parent=1 // pred_fallthru
      _
    // Predicated region
    $region30: #{tpu_custom_call.1} parent=1 // pred_check
      _
    $region31: #{tpu_custom_call.1} parent=1 // pred_check_branch
      %65 = sbr.rel (0) target = $region33
    $region32: #{tpu_custom_call.1} parent=1 // pred_region
      %66 = dma.done [#allocation8], 16
    $region33: #{tpu_custom_call.1} parent=1 // pred_fallthru
      _
    // Predicated region
    $region34: #{tpu_custom_call.1} parent=1 // pred_check
      _
    $region35: #{tpu_custom_call.1} parent=1 // pred_check_branch
      %68 = sbr.rel (0) target = $region37
    $region36: #{tpu_custom_call.1} parent=1 // pred_region
      %69 = dma.done [#allocation8], 16
    $region37: #{tpu_custom_call.1} parent=1 // pred_fallthru
      _
    // Predicated region
    $region38: #{tpu_custom_call.1} parent=1 // pred_check
      _
    $region39: #{tpu_custom_call.1} parent=1 // pred_check_branch
      %71 = sbr.rel (0) target = $region41
    $region40: #{tpu_custom_call.1} parent=1 // pred_region
      %72 = dma.done [#allocation4], 1536
    $region41: #{tpu_custom_call.1} parent=1 // pred_fallthru
      _
    %73 = sfence
    %v75 = vld [vmem:[%s4] sm:$0xf]
    %v76 = vld [vmem:[%s4 + $0x4] sm:$0xf]
    %v77 = vld [vmem:[%s4 + $0x8] sm:$0xf]
    %v78 = vld [vmem:[%s4 + $0xc] sm:$0xf]
    %v79 = vld [vmem:[%s4 + $0x10] sm:$0xf]
    %v80 = vld [vmem:[%s4 + $0x14] sm:$0xf]
    %v81 = vld [vmem:[%s4 + $0x18] sm:$0xf]
    %v82 = vld [vmem:[%s4 + $0x1c] sm:$0xf]
    %v83 = vld [vmem:[#allocation10] sm:$0xff]
    %v84 = vld [vmem:[#allocation10 + $0x8] sm:$0xff]
    %s85 = scalar_lea.vmem [#allocation10], 16
    %v86 = vld [vmem:[%s85] sm:$0xff]
    %v87 = vld [vmem:[%s85 + $0x8] sm:$0xff]
    %v88 = vadd.f32 %v83, %v86
    %v89 = vadd.f32 %v84, %v87
    %s90 = scalar_lea.vmem [#allocation10], 32
    %v91 = vld [vmem:[%s90] sm:$0xff]
    %v92 = vld [vmem:[%s90 + $0x8] sm:$0xff]
    %v93 = vadd.f32 %v88, %v91
    %v94 = vadd.f32 %v89, %v92
    %v95 = vmul.f32 %v93, 0.33333334
    %v96 = vmul.f32 %v94, 0.33333334
    %v97 = vpack.c.bf16 %v96, %v95
    %v106 = vunpack.c.l.b16 %v75
    %v107 = vunpack.c.l.b16 %v76
    %v108 = vunpack.c.l.b16 %v77
    %v109 = vunpack.c.l.b16 %v78
    %v110 = vunpack.c.l.b16 %v79
    %v111 = vunpack.c.l.b16 %v80
    %v112 = vunpack.c.l.b16 %v81
    %v113 = vunpack.c.l.b16 %v82
    %v114 = vpack.c.b16 %v107, %v106
    %v115 = vpack.c.b16 %v109, %v108
    %v116 = vpack.c.b16 %v111, %v110
    %v117 = vpack.c.b16 %v113, %v112
    %vm118 = vcmask 130048
    %v120 = vsel %vm118, %v114, 0
    %v123 = vsel %vm118, %v115, 0
    %v126 = vsel %vm118, %v116, 0
    %v129 = vsel %vm118, %v117, 0
    %131 = vmatprep.subr.bf16.mxu0 0
    %132 = vmatpush1.bf16.msra.mxu0 0
    %133 = vmatprep.subr.bf16.mxu0 0
    %134 = vmatpush1.bf16.msra.mxu0 0
    %135 = vmatprep.subr.bf16.mxu0 0
    %136 = vmatpush1.bf16.msra.mxu0 0
    %137 = vmatprep.subr.bf16.mxu0 0
    %138 = vmatpush1.bf16.msra.mxu0 0
    %139 = vmatprep.subr.bf16.mxu0 0
    %140 = vmatpush1.bf16.msra.mxu0 0
    %141 = vmatprep.subr.bf16.mxu0 0
    %142 = vmatpush1.bf16.msra.mxu0 0
    %143 = vmatprep.subr.bf16.mxu0 0
    %144 = vmatpush1.bf16.msra.mxu0 0
    %145 = vmatprep.subr.bf16.mxu0 0
    %146 = vmatpush1.bf16.msra.mxu0 %v97
    %147 = vmatprep.subr.bf16.mxu0 0
    %148 = vmatpush2.bf16.msra.mxu0 0
    %149 = vmatprep.subr.bf16.mxu0 0
    %150 = vmatpush2.bf16.msra.mxu0 0
    %151 = vmatprep.subr.bf16.mxu0 0
    %152 = vmatpush2.bf16.msra.mxu0 0
    %153 = vmatprep.subr.bf16.mxu0 0
    %154 = vmatpush2.bf16.msra.mxu0 0
    %155 = vmatprep.subr.bf16.mxu0 0
    %156 = vmatpush2.bf16.msra.mxu0 0
    %157 = vmatprep.subr.bf16.mxu0 0
    %158 = vmatpush2.bf16.msra.mxu0 0
    %159 = vmatprep.subr.bf16.mxu0 0
    %160 = vmatpush2.bf16.msra.mxu0 0
    %161 = vmatprep.subr.bf16.mxu0 0
    %162 = vmatpush2.bf16.msra.mxu0 0
    %163 = vmatprep.mubr.bf16.mxu0 0
    %164 = vmatmul.mubr.bf16.gmra.mxu0 %v120
    %v165 = vpop.f32.mrf.mxu0
    %v166 = vadd.f32 0.0, %v165
    %v167 = vpop.f32.mrf.mxu0
    %v168 = vpop.f32.mrf.mxu0
    %v169 = vadd.f32 0.0, %v168
    %v170 = vpop.f32.mrf.mxu0
    %171 = vmatprep.mubr.bf16.mxu0 0
    %172 = vmatmul.mubr.bf16.gmra.mxu0 %v123
    %v173 = vpop.f32.mrf.mxu0
    %v174 = vadd.f32 0.0, %v173
    %v175 = vpop.f32.mrf.mxu0
    %v176 = vpop.f32.mrf.mxu0
    %v177 = vadd.f32 0.0, %v176
    %v178 = vpop.f32.mrf.mxu0
    %179 = vmatprep.mubr.bf16.mxu0 0
    %180 = vmatmul.mubr.bf16.gmra.mxu0 %v126
    %v181 = vpop.f32.mrf.mxu0
    %v182 = vadd.f32 0.0, %v181
    %v183 = vpop.f32.mrf.mxu0
    %v184 = vpop.f32.mrf.mxu0
    %v185 = vadd.f32 0.0, %v184
    %v186 = vpop.f32.mrf.mxu0
    %187 = vmatprep.mubr.bf16.mxu0 0
    %188 = vmatmul.mubr.bf16.gmra.mxu0 %v129
    %v189 = vpop.f32.mrf.mxu0
    %v190 = vadd.f32 0.0, %v189
    %v191 = vpop.f32.mrf.mxu0
    %v192 = vpop.f32.mrf.mxu0
    %v193 = vadd.f32 0.0, %v192
    %v194 = vpop.f32.mrf.mxu0
    %195 = vdwg.mxu0
    %v196 = vpack.c.bf16 %v169, %v166
    %v197 = vpack.c.bf16 %v177, %v174
    %v198 = vpack.c.bf16 %v185, %v182
    %v199 = vpack.c.bf16 %v193, %v190
    %v204 = vunpack.c.l.b16 %v196
    %v205 = vunpack.c.h.b16 %v196
    %v206 = vunpack.c.l.b16 %v197
    %v207 = vunpack.c.h.b16 %v197
    %v208 = vunpack.c.l.b16 %v198
    %v209 = vunpack.c.h.b16 %v198
    %v210 = vunpack.c.l.b16 %v199
    %v211 = vunpack.c.h.b16 %v199
    %v212 = vpack.c.b16 %v204, %v204
    %v213 = vpack.c.b16 %v205, %v205
    %v214 = vpack.c.b16 %v206, %v206
    %v215 = vpack.c.b16 %v207, %v207
    %v216 = vpack.c.b16 %v208, %v208
    %v217 = vpack.c.b16 %v209, %v209
    %v218 = vpack.c.b16 %v210, %v210
    %v219 = vpack.c.b16 %v211, %v211
    %vm228 = vcmask 125952
    %229 = vst.msk [vmem:[#allocation2] sm:$0xf] %vm228, %v212
    %230 = vst.msk [vmem:[#allocation2 + $0x4] sm:$0xf] %vm228, %v213
    %231 = vst.msk [vmem:[#allocation2 + $0x8] sm:$0xf] %vm228, %v214
    %232 = vst.msk [vmem:[#allocation2 + $0xc] sm:$0xf] %vm228, %v215
    %233 = vst.msk [vmem:[#allocation2 + $0x10] sm:$0xf] %vm228, %v216
    %234 = vst.msk [vmem:[#allocation2 + $0x14] sm:$0xf] %vm228, %v217
    %235 = vst.msk [vmem:[#allocation2 + $0x18] sm:$0xf] %vm228, %v218
    %236 = vst.msk [vmem:[#allocation2 + $0x1c] sm:$0xf] %vm228, %v219
    %s237 = scalar_lea.vmem [#allocation10], 48
    %v238 = vld [vmem:[%s237] sm:$0xff]
    %v239 = vld [vmem:[%s237 + $0x8] sm:$0xff]
    %s240 = scalar_lea.vmem [#allocation10], 64
    %v241 = vld [vmem:[%s240] sm:$0xff]
    %v242 = vld [vmem:[%s240 + $0x8] sm:$0xff]
    %v243 = vadd.f32 %v238, %v241
    %v244 = vadd.f32 %v239, %v242
    %s245 = scalar_lea.vmem [#allocation10], 80
    %v246 = vld [vmem:[%s245] sm:$0xff]
    %v247 = vld [vmem:[%s245 + $0x8] sm:$0xff]
    %v248 = vadd.f32 %v243, %v246
    %v249 = vadd.f32 %v244, %v247
    %v250 = vmul.f32 %v248, 0.33333334
    %v251 = vmul.f32 %v249, 0.33333334
    %v252 = vpack.c.bf16 %v251, %v250
    %253 = vmatprep.subr.bf16.mxu0 0
    %254 = vmatpush1.bf16.msra.mxu0 0
    %255 = vmatprep.subr.bf16.mxu0 0
    %256 = vmatpush1.bf16.msra.mxu0 0
    %257 = vmatprep.subr.bf16.mxu0 0
    %258 = vmatpush1.bf16.msra.mxu0 0
    %259 = vmatprep.subr.bf16.mxu0 0
    %260 = vmatpush1.bf16.msra.mxu0 0
    %261 = vmatprep.subr.bf16.mxu0 0
    %262 = vmatpush1.bf16.msra.mxu0 0
    %263 = vmatprep.subr.bf16.mxu0 0
    %264 = vmatpush1.bf16.msra.mxu0 0
    %265 = vmatprep.subr.bf16.mxu0 0
    %266 = vmatpush1.bf16.msra.mxu0 0
    %267 = vmatprep.subr.bf16.mxu0 0
    %268 = vmatpush1.bf16.msra.mxu0 %v252
    %269 = vmatprep.subr.bf16.mxu0 0
    %270 = vmatpush2.bf16.msra.mxu0 0
    %271 = vmatprep.subr.bf16.mxu0 0
    %272 = vmatpush2.bf16.msra.mxu0 0
    %273 = vmatprep.subr.bf16.mxu0 0
    %274 = vmatpush2.bf16.msra.mxu0 0
    %275 = vmatprep.subr.bf16.mxu0 0
    %276 = vmatpush2.bf16.msra.mxu0 0
    %277 = vmatprep.subr.bf16.mxu0 0
    %278 = vmatpush2.bf16.msra.mxu0 0
    %279 = vmatprep.subr.bf16.mxu0 0
    %280 = vmatpush2.bf16.msra.mxu0 0
    %281 = vmatprep.subr.bf16.mxu0 0
    %282 = vmatpush2.bf16.msra.mxu0 0
    %283 = vmatprep.subr.bf16.mxu0 0
    %284 = vmatpush2.bf16.msra.mxu0 0
    %285 = vmatprep.mubr.bf16.mxu0 0
    %286 = vmatmul.mubr.bf16.gmra.mxu0 %v120
    %v287 = vpop.f32.mrf.mxu0
    %v288 = vadd.f32 0.0, %v287
    %v289 = vpop.f32.mrf.mxu0
    %v290 = vpop.f32.mrf.mxu0
    %v291 = vadd.f32 0.0, %v290
    %v292 = vpop.f32.mrf.mxu0
    %293 = vmatprep.mubr.bf16.mxu0 0
    %294 = vmatmul.mubr.bf16.gmra.mxu0 %v123
    %v295 = vpop.f32.mrf.mxu0
    %v296 = vadd.f32 0.0, %v295
    %v297 = vpop.f32.mrf.mxu0
    %v298 = vpop.f32.mrf.mxu0
    %v299 = vadd.f32 0.0, %v298
    %v300 = vpop.f32.mrf.mxu0
    %301 = vmatprep.mubr.bf16.mxu0 0
    %302 = vmatmul.mubr.bf16.gmra.mxu0 %v126
    %v303 = vpop.f32.mrf.mxu0
    %v304 = vadd.f32 0.0, %v303
    %v305 = vpop.f32.mrf.mxu0
    %v306 = vpop.f32.mrf.mxu0
    %v307 = vadd.f32 0.0, %v306
    %v308 = vpop.f32.mrf.mxu0
    %309 = vmatprep.mubr.bf16.mxu0 0
    %310 = vmatmul.mubr.bf16.gmra.mxu0 %v129
    %v311 = vpop.f32.mrf.mxu0
    %v312 = vadd.f32 0.0, %v311
    %v313 = vpop.f32.mrf.mxu0
    %v314 = vpop.f32.mrf.mxu0
    %v315 = vadd.f32 0.0, %v314
    %v316 = vpop.f32.mrf.mxu0
    %317 = vdwg.mxu0
    %v318 = vpack.c.bf16 %v291, %v288
    %v319 = vpack.c.bf16 %v299, %v296
    %v320 = vpack.c.bf16 %v307, %v304
    %v321 = vpack.c.bf16 %v315, %v312
    %v326 = vunpack.c.l.b16 %v318
    %v327 = vunpack.c.h.b16 %v318
    %v328 = vunpack.c.l.b16 %v319
    %v329 = vunpack.c.h.b16 %v319
    %v330 = vunpack.c.l.b16 %v320
    %v331 = vunpack.c.h.b16 %v320
    %v332 = vunpack.c.l.b16 %v321
    %v333 = vunpack.c.h.b16 %v321
    %v334 = vpack.c.b16 %v326, %v326
    %v335 = vpack.c.b16 %v327, %v327
    %v336 = vpack.c.b16 %v328, %v328
    %v337 = vpack.c.b16 %v329, %v329
    %v338 = vpack.c.b16 %v330, %v330
    %v339 = vpack.c.b16 %v331, %v331
    %v340 = vpack.c.b16 %v332, %v332
    %v341 = vpack.c.b16 %v333, %v333
    %350 = vst.msk [vmem:[#allocation2 + $0x20] sm:$0xf] %vm228, %v334
    %351 = vst.msk [vmem:[#allocation2 + $0x24] sm:$0xf] %vm228, %v335
    %352 = vst.msk [vmem:[#allocation2 + $0x28] sm:$0xf] %vm228, %v336
    %353 = vst.msk [vmem:[#allocation2 + $0x2c] sm:$0xf] %vm228, %v337
    %354 = vst.msk [vmem:[#allocation2 + $0x30] sm:$0xf] %vm228, %v338
    %355 = vst.msk [vmem:[#allocation2 + $0x34] sm:$0xf] %vm228, %v339
    %356 = vst.msk [vmem:[#allocation2 + $0x38] sm:$0xf] %vm228, %v340
    %357 = vst.msk [vmem:[#allocation2 + $0x3c] sm:$0xf] %vm228, %v341
    %v358 = vld [vmem:[#allocation2] sm:$0xf]
    %v359 = vld [vmem:[#allocation2 + $0x4] sm:$0xf]
    %v360 = vld [vmem:[#allocation2 + $0x8] sm:$0xf]
    %v361 = vld [vmem:[#allocation2 + $0xc] sm:$0xf]
    %v362 = vld [vmem:[#allocation2 + $0x10] sm:$0xf]
    %v363 = vld [vmem:[#allocation2 + $0x14] sm:$0xf]
    %v364 = vld [vmem:[#allocation2 + $0x18] sm:$0xf]
    %v365 = vld [vmem:[#allocation2 + $0x1c] sm:$0xf]
    %v366 = vld [vmem:[#allocation2 + $0x20] sm:$0xf]
    %v367 = vld [vmem:[#allocation2 + $0x24] sm:$0xf]
    %v368 = vld [vmem:[#allocation2 + $0x28] sm:$0xf]
    %v369 = vld [vmem:[#allocation2 + $0x2c] sm:$0xf]
    %v370 = vld [vmem:[#allocation2 + $0x30] sm:$0xf]
    %v371 = vld [vmem:[#allocation2 + $0x34] sm:$0xf]
    %v372 = vld [vmem:[#allocation2 + $0x38] sm:$0xf]
    %v373 = vld [vmem:[#allocation2 + $0x3c] sm:$0xf]
    %v374 = vld [vmem:[%s5] sm:$0xf]
    %v375 = vld [vmem:[%s5 + $0x4] sm:$0xf]
    %v392 = vunpack.c.l.b16 %v358
    %v393 = vunpack.c.l.b16 %v359
    %v394 = vunpack.c.l.b16 %v360
    %v395 = vunpack.c.l.b16 %v361
    %v396 = vunpack.c.l.b16 %v362
    %v397 = vunpack.c.l.b16 %v363
    %v398 = vunpack.c.l.b16 %v364
    %v399 = vunpack.c.l.b16 %v365
    %v400 = vunpack.c.l.b16 %v366
    %v401 = vunpack.c.l.b16 %v367
    %v402 = vunpack.c.l.b16 %v368
    %v403 = vunpack.c.l.b16 %v369
    %v404 = vunpack.c.l.b16 %v370
    %v405 = vunpack.c.l.b16 %v371
    %v406 = vunpack.c.l.b16 %v372
    %v407 = vunpack.c.l.b16 %v373
    %v408 = vpack.c.b16 %v393, %v392
    %v409 = vpack.c.b16 %v395, %v394
    %v410 = vpack.c.b16 %v397, %v396
    %v411 = vpack.c.b16 %v399, %v398
    %v412 = vpack.c.b16 %v401, %v400
    %v413 = vpack.c.b16 %v403, %v402
    %v414 = vpack.c.b16 %v405, %v404
    %v415 = vpack.c.b16 %v407, %v406
    %v418 = vunpack.c.l.b16 %v374
    %v419 = vunpack.c.l.b16 %v375
    %v420 = vpack.c.b16 %v419, %v418
    %v423 = vsel %vm118, %v408, 0
    %v426 = vsel %vm118, %v409, 0
    %v429 = vsel %vm118, %v410, 0
    %v432 = vsel %vm118, %v411, 0
    %v435 = vsel %vm118, %v412, 0
    %v438 = vsel %vm118, %v413, 0
    %v441 = vsel %vm118, %v414, 0
    %v444 = vsel %vm118, %v415, 0
    %446 = vmatprep.subr.bf16.mxu0 0
    %447 = vmatpush1.bf16.msra.mxu0 0
    %448 = vmatprep.subr.bf16.mxu0 0
    %449 = vmatpush1.bf16.msra.mxu0 0
    %450 = vmatprep.subr.bf16.mxu0 0
    %451 = vmatpush1.bf16.msra.mxu0 0
    %452 = vmatprep.subr.bf16.mxu0 0
    %453 = vmatpush1.bf16.msra.mxu0 0
    %454 = vmatprep.subr.bf16.mxu0 0
    %455 = vmatpush1.bf16.msra.mxu0 0
    %456 = vmatprep.subr.bf16.mxu0 0
    %457 = vmatpush1.bf16.msra.mxu0 0
    %458 = vmatprep.subr.bf16.mxu0 0
    %459 = vmatpush1.bf16.msra.mxu0 0
    %460 = vmatprep.subr.bf16.mxu0 0
    %461 = vmatpush1.bf16.msra.mxu0 %v420
    %462 = vmatprep.subr.bf16.mxu0 0
    %463 = vmatpush2.bf16.msra.mxu0 0
    %464 = vmatprep.subr.bf16.mxu0 0
    %465 = vmatpush2.bf16.msra.mxu0 0
    %466 = vmatprep.subr.bf16.mxu0 0
    %467 = vmatpush2.bf16.msra.mxu0 0
    %468 = vmatprep.subr.bf16.mxu0 0
    %469 = vmatpush2.bf16.msra.mxu0 0
    %470 = vmatprep.subr.bf16.mxu0 0
    %471 = vmatpush2.bf16.msra.mxu0 0
    %472 = vmatprep.subr.bf16.mxu0 0
    %473 = vmatpush2.bf16.msra.mxu0 0
    %474 = vmatprep.subr.bf16.mxu0 0
    %475 = vmatpush2.bf16.msra.mxu0 0
    %476 = vmatprep.subr.bf16.mxu0 0
    %477 = vmatpush2.bf16.msra.mxu0 0
    %478 = vmatprep.mubr.bf16.mxu0 0
    %479 = vmatmul.mubr.bf16.gmra.mxu0 %v423
    %v480 = vpop.f32.mrf.mxu0
    %v481 = vadd.f32 0.0, %v480
    %v482 = vpop.f32.mrf.mxu0
    %v483 = vpop.f32.mrf.mxu0
    %v484 = vadd.f32 0.0, %v483
    %v485 = vpop.f32.mrf.mxu0
    %486 = vmatprep.mubr.bf16.mxu0 0
    %487 = vmatmul.mubr.bf16.gmra.mxu0 %v426
    %v488 = vpop.f32.mrf.mxu0
    %v489 = vadd.f32 0.0, %v488
    %v490 = vpop.f32.mrf.mxu0
    %v491 = vpop.f32.mrf.mxu0
    %v492 = vadd.f32 0.0, %v491
    %v493 = vpop.f32.mrf.mxu0
    %494 = vmatprep.mubr.bf16.mxu0 0
    %495 = vmatmul.mubr.bf16.gmra.mxu0 %v429
    %v496 = vpop.f32.mrf.mxu0
    %v497 = vadd.f32 0.0, %v496
    %v498 = vpop.f32.mrf.mxu0
    %v499 = vpop.f32.mrf.mxu0
    %v500 = vadd.f32 0.0, %v499
    %v501 = vpop.f32.mrf.mxu0
    %502 = vmatprep.mubr.bf16.mxu0 0
    %503 = vmatmul.mubr.bf16.gmra.mxu0 %v432
    %v504 = vpop.f32.mrf.mxu0
    %v505 = vadd.f32 0.0, %v504
    %v506 = vpop.f32.mrf.mxu0
    %v507 = vpop.f32.mrf.mxu0
    %v508 = vadd.f32 0.0, %v507
    %v509 = vpop.f32.mrf.mxu0
    %510 = vmatprep.mubr.bf16.mxu0 0
    %511 = vmatmul.mubr.bf16.gmra.mxu0 %v435
    %v512 = vpop.f32.mrf.mxu0
    %v513 = vadd.f32 0.0, %v512
    %v514 = vpop.f32.mrf.mxu0
    %v515 = vpop.f32.mrf.mxu0
    %v516 = vadd.f32 0.0, %v515
    %v517 = vpop.f32.mrf.mxu0
    %518 = vmatprep.mubr.bf16.mxu0 0
    %519 = vmatmul.mubr.bf16.gmra.mxu0 %v438
    %v520 = vpop.f32.mrf.mxu0
    %v521 = vadd.f32 0.0, %v520
    %v522 = vpop.f32.mrf.mxu0
    %v523 = vpop.f32.mrf.mxu0
    %v524 = vadd.f32 0.0, %v523
    %v525 = vpop.f32.mrf.mxu0
    %526 = vmatprep.mubr.bf16.mxu0 0
    %527 = vmatmul.mubr.bf16.gmra.mxu0 %v441
    %v528 = vpop.f32.mrf.mxu0
    %v529 = vadd.f32 0.0, %v528
    %v530 = vpop.f32.mrf.mxu0
    %v531 = vpop.f32.mrf.mxu0
    %v532 = vadd.f32 0.0, %v531
    %v533 = vpop.f32.mrf.mxu0
    %534 = vmatprep.mubr.bf16.mxu0 0
    %535 = vmatmul.mubr.bf16.gmra.mxu0 %v444
    %v536 = vpop.f32.mrf.mxu0
    %v537 = vadd.f32 0.0, %v536
    %v538 = vpop.f32.mrf.mxu0
    %v539 = vpop.f32.mrf.mxu0
    %v540 = vadd.f32 0.0, %v539
    %v541 = vpop.f32.mrf.mxu0
    %542 = vdwg.mxu0
    %vm543 = vcmask 523264
    %544 = vst.msk [vmem:[#allocation11] sm:$0xff] %vm543, %v481
    %545 = vst.msk [vmem:[#allocation11 + $0x8] sm:$0xff] %vm543, %v484
    %546 = vst.msk [vmem:[#allocation11 + $0x10] sm:$0xff] %vm543, %v489
    %547 = vst.msk [vmem:[#allocation11 + $0x18] sm:$0xff] %vm543, %v492
    %548 = vst.msk [vmem:[#allocation11 + $0x20] sm:$0xff] %vm543, %v497
    %549 = vst.msk [vmem:[#allocation11 + $0x28] sm:$0xff] %vm543, %v500
    %550 = vst.msk [vmem:[#allocation11 + $0x30] sm:$0xff] %vm543, %v505
    %551 = vst.msk [vmem:[#allocation11 + $0x38] sm:$0xff] %vm543, %v508
    %552 = vst.msk [vmem:[#allocation11 + $0x40] sm:$0xff] %vm543, %v513
    %553 = vst.msk [vmem:[#allocation11 + $0x48] sm:$0xff] %vm543, %v516
    %554 = vst.msk [vmem:[#allocation11 + $0x50] sm:$0xff] %vm543, %v521
    %555 = vst.msk [vmem:[#allocation11 + $0x58] sm:$0xff] %vm543, %v524
    %556 = vst.msk [vmem:[#allocation11 + $0x60] sm:$0xff] %vm543, %v529
    %557 = vst.msk [vmem:[#allocation11 + $0x68] sm:$0xff] %vm543, %v532
    %558 = vst.msk [vmem:[#allocation11 + $0x70] sm:$0xff] %vm543, %v537
    %559 = vst.msk [vmem:[#allocation11 + $0x78] sm:$0xff] %vm543, %v540
    // Predicated region
    $region42: #{tpu_custom_call.1} parent=1 // pred_check
      _
    $region43: #{tpu_custom_call.1} parent=1 // pred_check_branch
      %561 = sbr.rel (0) target = $region45
    $region44: #{tpu_custom_call.1} parent=1 // pred_region
      %s563 = ssub.s32 2048, 2048
      %564 = vsyncadd [#allocation5], %s563
      %s565 = sshll.u32 [#allocation11], 4
      %s566 = int_to_ptr.vmem [resolvable:$true] %s565
      %571 = dma.vmem_to_hbm [thread:$0]  %s566, 2048, %s6, [#allocation5], 128, 128, 8
    $region45: #{tpu_custom_call.1} parent=1 // pred_fallthru
      _
    // Predicated region
    $region46: #{tpu_custom_call.1} parent=1 // pred_check
      _
    $region47: #{tpu_custom_call.1} parent=1 // pred_check_branch
      %573 = sbr.rel (0) target = $region49
    $region48: #{tpu_custom_call.1} parent=1 // pred_region
      %574 = dma.done [#allocation5], 2048
    $region49: #{tpu_custom_call.1} parent=1 // pred_fallthru
      _
    %575 = vsyncpa [#allocation4], 1
    %576 = vsyncpa [#allocation5], 1
    %577 = vsyncpa [#allocation6], 1
    %578 = vsyncpa [#allocation8], 1

</llo_original>
